<compile_context>
chip_gen: v7x
topology: tpu7x:2x2x1
jax: 0.10.0
libtpu: 0.0.40
codegen_flags: <defaults>
</compile_context>

<pallas_src>
import math
import jax
import jax.numpy as jnp
from jax import lax
from jax.experimental import pallas as pl
from jax.experimental.pallas import tpu as pltpu

SIGMA_ZERO = 0.5   # `sigma_zero` global in the reference script (Rainbow default)
HIDDEN = 128


def _round_up(x, m):
    return (x + m - 1) // m * m


def _cdiv(a, b):
    return -(-a // b)


# ---------------------------------------------------------------------------
# Kernel: one batch tile per grid step, weights resident (constant index maps).
# Output is q^T with shape (A_pad, b_tile): actions on sublanes, batch on lanes.
# ---------------------------------------------------------------------------
def qnet_kernel(x_ref, w_fc_t_ref, b_fc_t_ref, w_q_t_ref, b_q_t_ref, qt_ref):
    # fc + ReLU, transposed: h^T = relu(W_fc^T @ x^T + b_fc^T), shape (128, b_tile).
    # Contract the feature axis of both operands (NT matmul) so x needs no
    # transpose op, in-kernel or wrapper-side.
    h_t = lax.dot_general(
        w_fc_t_ref[...], x_ref[...],
        dimension_numbers=(((1,), (1,)), ((), ())),
        preferred_element_type=jnp.float32)
    h_t = jnp.maximum(h_t + b_fc_t_ref[...], 0.0)
    # Fused dueling head (value stream + mean-subtracted NoisyLinear advantage),
    # also transposed: q^T = W_q^T @ h^T, shape (A_pad=8, b_tile) -> lane-dense store.
    q_t = jnp.dot(w_q_t_ref[...], h_t, preferred_element_type=jnp.float32)
    qt_ref[...] = q_t + b_q_t_ref[...]


# ---------------------------------------------------------------------------
# Per-noise-resample preprocessing (plain JAX, runs rarely vs. forward calls).
# ---------------------------------------------------------------------------
def fuse_head_params(params):
    """Build fused, transposed inference parameters (actions padded to 8 sublanes)."""
    w_adv = params["wadv_mu"] + params["wadv_sigma"] * params["wadv_eps"]     # (H, A)
    b_adv = params["badv_mu"] + params["badv_sigma"] * params["badv_eps"]     # (1, A)
    # q = val + adv - mean(adv)  ==  h @ w_q + b_q
    w_q = (w_adv - jnp.mean(w_adv, axis=1, keepdims=True)) + params["w_val"]  # (H, A)
    b_q = (b_adv - jnp.mean(b_adv, axis=1, keepdims=True)) + params["b_val"]  # (1, A)
    a = w_q.shape[1]
    a_pad = _round_up(max(a, 8), 8)           # one f32 sublane group, not 128 lanes
    # transpose -> actions on sublanes; zero-pad rows give exactly-zero padded
    # output rows (the mean fold was computed before padding), sliced off later.
    w_q_t = jnp.pad(w_q.T, ((0, a_pad - a), (0, 0)))                          # (a_pad, H)
    b_q_t = jnp.pad(b_q.T, ((0, a_pad - a), (0, 0)))                          # (a_pad, 1)
    return {
        "w_fc_t": params["w_fc"].T.astype(jnp.float32),   # (H, num_inputs)
        "b_fc_t": params["b_fc"].T.astype(jnp.float32),   # (H, 1)
        "w_q_t": w_q_t.astype(jnp.float32),               # (a_pad, H)
        "b_q_t": b_q_t.astype(jnp.float32),               # (a_pad, 1)
    }


# ---------------------------------------------------------------------------
# Forward wrapper.
# ---------------------------------------------------------------------------
def qnet_forward(x, fused, num_outputs):
    B, num_inputs = x.shape
    a_pad = fused["w_q_t"].shape[0]

    # Batch tiling: batch is the lane axis of the output, so multi-tile grids need
    # 128-aligned tiles.  Small B -> one exact tile (block == full shape: no
    # alignment constraint, no wrapper pad, single grid step).  B >= 256 -> at
    # least 2 tiles (both v7x TensorCores busy), up to 2048 rows per tile.
    if B >= 256:
        cap = 2048
        n_tiles = max(2, _cdiv(B, cap))
        b_tile = _round_up(_cdiv(B, n_tiles), 128)
        b_pad = _round_up(B, b_tile)
    else:
        b_tile = B
        b_pad = B

    xp = x if b_pad == B else jnp.pad(x, ((0, b_pad - B), (0, 0)))

    flops = 2 * b_pad * (num_inputs * HIDDEN + HIDDEN * a_pad)
    bytes_accessed = (b_pad * num_inputs * 4                 # x
                      + HIDDEN * (num_inputs + 1) * 4        # fc params
                      + a_pad * (HIDDEN + 1) * 4             # fused head params
                      + a_pad * b_pad * 4)                   # q^T output

    qt_pad = pl.pallas_call(
        qnet_kernel,
        out_shape=jax.ShapeDtypeStruct((a_pad, b_pad), jnp.float32),
        grid_spec=pltpu.PrefetchScalarGridSpec(
            num_scalar_prefetch=0,
            grid=(b_pad // b_tile,),
            in_specs=[
                pl.BlockSpec((b_tile, num_inputs), lambda i: (i, 0)),   # x tile
                pl.BlockSpec((HIDDEN, num_inputs), lambda i: (0, 0)),   # W_fc^T
                pl.BlockSpec((HIDDEN, 1), lambda i: (0, 0)),            # b_fc^T
                pl.BlockSpec((a_pad, HIDDEN), lambda i: (0, 0)),        # W_q^T (fused)
                pl.BlockSpec((a_pad, 1), lambda i: (0, 0)),             # b_q^T (fused)
            ],
            out_specs=pl.BlockSpec((a_pad, b_tile), lambda i: (0, i)),
        ),
        compiler_params=pltpu.CompilerParams(
            dimension_semantics=("parallel",),   # shards batch tiles across TCs on v7x
        ),
        cost_estimate=pl.CostEstimate(
            flops=flops, transcendentals=0, bytes_accessed=bytes_accessed),
    )(xp, fused["w_fc_t"], fused["b_fc_t"], fused["w_q_t"], fused["b_q_t"])

    # q^T is (a_pad, b_pad); slicing off <=7 padded action rows + padded batch
    # columns and transposing back to the module's (B, A) layout is tiny compared
    # with the old 128-lane-padded output.  Hot-path consumers (argmax over
    # actions) can use qt_pad[:num_outputs, :B] directly (argmax over axis 0).
    return qt_pad[:num_outputs, :B].T


# ---------------------------------------------------------------------------
# Parameter init mirroring the PyTorch module (weights stored (in, out)).
# ---------------------------------------------------------------------------
def scale_noise(key, size):
    # PyTorch: x = randn(size); x.sign() * x.abs().sqrt()
    x = jax.random.normal(key, (size,), dtype=jnp.float32)
    return jnp.sign(x) * jnp.sqrt(jnp.abs(x))


def xavier_uniform(key, fan_in, fan_out):
    bound = math.sqrt(6.0 / (fan_in + fan_out))
    return jax.random.uniform(key, (fan_in, fan_out), jnp.float32, -bound, bound)


def init_params(key, num_inputs, num_outputs, hidden=HIDDEN):
    ks = jax.random.split(key, 8)

    # fc: Linear(num_inputs, 128), xavier_uniform weight, default uniform bias
    w_fc = xavier_uniform(ks[0], num_inputs, hidden)
    b_fc = jax.random.uniform(ks[1], (1, hidden), jnp.float32,
                              -1.0 / math.sqrt(num_inputs), 1.0 / math.sqrt(num_inputs))

    # fc_val: Linear(128, 1), xavier_uniform weight
    w_val = xavier_uniform(ks[2], hidden, 1)
    b_val = jax.random.uniform(ks[3], (1, 1), jnp.float32,
                               -1.0 / math.sqrt(hidden), 1.0 / math.sqrt(hidden))

    # fc_adv: NoisyLinear(128, num_outputs)
    mu_range = 1.0 / math.sqrt(hidden)
    wadv_mu = jax.random.uniform(ks[4], (hidden, num_outputs), jnp.float32,
                                 -mu_range, mu_range)
    wadv_sigma = jnp.full((hidden, num_outputs), SIGMA_ZERO / math.sqrt(hidden),
                          dtype=jnp.float32)
    badv_mu = jax.random.uniform(ks[5], (1, num_outputs), jnp.float32,
                                 -mu_range, mu_range)
    badv_sigma = jnp.full((1, num_outputs), SIGMA_ZERO / math.sqrt(num_outputs),
                          dtype=jnp.float32)

    # factorized noise: eps_W = eps_out ger eps_in  (stored transposed: outer(in, out))
    eps_in = scale_noise(ks[6], hidden)
    eps_out = scale_noise(ks[7], num_outputs)
    wadv_eps = jnp.outer(eps_in, eps_out)          # (hidden, num_outputs)
    badv_eps = eps_out.reshape(1, num_outputs)

    return {
        "w_fc": w_fc, "b_fc": b_fc,
        "wadv_mu": wadv_mu, "wadv_sigma": wadv_sigma, "wadv_eps": wadv_eps,
        "badv_mu": badv_mu, "badv_sigma": badv_sigma, "badv_eps": badv_eps,
        "w_val": w_val, "b_val": b_val,
    }


def reference_forward(x, p):
    # Unfused f32 reference with the exact module semantics.
    h = jnp.maximum(x @ p["w_fc"] + p["b_fc"], 0.0)
    w_adv = p["wadv_mu"] + p["wadv_sigma"] * p["wadv_eps"]
    b_adv = p["badv_mu"] + p["badv_sigma"] * p["badv_eps"]
    adv = h @ w_adv + b_adv
    val = h @ p["w_val"] + p["b_val"]
    return val + (adv - adv.mean(axis=1, keepdims=True))


if __name__ == "__main__":
    key = jax.random.PRNGKey(0)
    k_x, k_x2, k_p = jax.random.split(key, 3)

    num_inputs, num_outputs = 16, 6
    params = init_params(k_p, num_inputs, num_outputs)
    fused = fuse_head_params(params)              # once per noise resample

    # Small-batch (acting) path: single exact tile, no wrapper pad/cast.
    batch = 2
    x = jax.random.normal(k_x, (batch, num_inputs), dtype=jnp.float32)
    q = jax.block_until_ready(qnet_forward(x, fused, num_outputs))
    q_ref = reference_forward(x, params)
    assert q.shape == (batch, num_outputs)
    assert jnp.allclose(q, q_ref, atol=1e-2, rtol=1e-2), "mismatch vs JAX reference (B=2)"

    # Larger ragged batch: exercises 128-aligned multi-tile grid + batch padding.
    batch2 = 300
    x2 = jax.random.normal(k_x2, (batch2, num_inputs), dtype=jnp.float32)
    q2 = jax.block_until_ready(qnet_forward(x2, fused, num_outputs))
    q2_ref = reference_forward(x2, params)
    assert q2.shape == (batch2, num_outputs)
    assert jnp.allclose(q2, q2_ref, atol=1e-2, rtol=1e-2), "mismatch vs JAX reference (B=300)"

    print("KERNEL_OK")
</pallas_src>

<mosaic_0001>
module attributes {stable_mosaic.version = 11 : i64} {
  func.func @qnet_kernel(%arg0: i32, %arg1: memref<2x16xf32, #tpu.memory_space<vmem>>, %arg2: memref<128x16xf32, #tpu.memory_space<vmem>>, %arg3: memref<128x1xf32, #tpu.memory_space<vmem>>, %arg4: memref<8x128xf32, #tpu.memory_space<vmem>>, %arg5: memref<8x1xf32, #tpu.memory_space<vmem>>, %arg6: memref<8x2xf32, #tpu.memory_space<vmem>>) attributes {dimension_semantics = [#tpu.dimension_semantics<parallel>], iteration_bounds = array<i64: 1>, scalar_prefetch = 0 : i64, scratch_operands = 0 : i64, tpu.core_type = #tpu.core_type<tc>, window_params = [{transform_indices = @transform_0, window_bounds = array<i64: 2, 16>}, {pipeline_mode = #tpu.pipeline_mode<synchronous>, transform_indices = @transform_1, window_bounds = array<i64: 128, 16>}, {pipeline_mode = #tpu.pipeline_mode<synchronous>, transform_indices = @transform_2, window_bounds = array<i64: 128, 1>}, {pipeline_mode = #tpu.pipeline_mode<synchronous>, transform_indices = @transform_3, window_bounds = array<i64: 8, 128>}, {pipeline_mode = #tpu.pipeline_mode<synchronous>, transform_indices = @transform_4, window_bounds = array<i64: 8, 1>}, {transform_indices = @transform_5, window_bounds = array<i64: 8, 2>}]} {
    %c0 = arith.constant 0 : index
    %c0_0 = arith.constant 0 : index
    %0 = vector.load %arg2[%c0, %c0_0] : memref<128x16xf32, #tpu.memory_space<vmem>>, vector<128x16xf32>
    %c0_1 = arith.constant 0 : index
    %c0_2 = arith.constant 0 : index
    %1 = vector.load %arg1[%c0_1, %c0_2] : memref<2x16xf32, #tpu.memory_space<vmem>>, vector<2x16xf32>
    %cst = arith.constant dense<0.000000e+00> : vector<128x2xf32>
    %2 = tpu.matmul %0, %1, %cst {dimension_numbers = #tpu.dot_dimension_numbers<[1], [1], [0], [0], [0, 0, 1, 0], [], []>} : vector<128x16xf32>, vector<2x16xf32>, vector<128x2xf32> -> vector<128x2xf32>
    %c0_3 = arith.constant 0 : index
    %c0_4 = arith.constant 0 : index
    %3 = vector.load %arg3[%c0_3, %c0_4] : memref<128x1xf32, #tpu.memory_space<vmem>>, vector<128x1xf32>
    %4 = vector.broadcast %3 : vector<128x1xf32> to vector<128x2xf32>
    %5 = arith.addf %2, %4 : vector<128x2xf32>
    %cst_5 = arith.constant 0.000000e+00 : f32
    %6 = vector.broadcast %cst_5 : f32 to vector<128x2xf32>
    %7 = arith.maximumf %5, %6 : vector<128x2xf32>
    %c0_6 = arith.constant 0 : index
    %c0_7 = arith.constant 0 : index
    %8 = vector.load %arg4[%c0_6, %c0_7] : memref<8x128xf32, #tpu.memory_space<vmem>>, vector<8x128xf32>
    %cst_8 = arith.constant dense<0.000000e+00> : vector<8x2xf32>
    %9 = tpu.matmul %8, %7, %cst_8 {dimension_numbers = #tpu.dot_dimension_numbers<[1], [0], [0], [1], [0, 0, 1, 1], [], []>} : vector<8x128xf32>, vector<128x2xf32>, vector<8x2xf32> -> vector<8x2xf32>
    %c0_9 = arith.constant 0 : index
    %c0_10 = arith.constant 0 : index
    %10 = vector.load %arg5[%c0_9, %c0_10] : memref<8x1xf32, #tpu.memory_space<vmem>>, vector<8x1xf32>
    %11 = vector.broadcast %10 : vector<8x1xf32> to vector<8x2xf32>
    %12 = arith.addf %9, %11 : vector<8x2xf32>
    %c0_11 = arith.constant 0 : index
    %c0_12 = arith.constant 0 : index
    %13 = vector.load %arg6[%c0_11, %c0_12] : memref<8x2xf32, #tpu.memory_space<vmem>>, vector<8x2xf32>
    tpu.vector_store %arg6[%c0_11, %c0_12], %12 {strides = array<i32>} : memref<8x2xf32, #tpu.memory_space<vmem>>, vector<8x2xf32>,
    return
  }
  func.func @transform_0(%arg0: i32) -> (i32, i32) {
    %c0_i32 = arith.constant 0 : i32
    %c0_i32_0 = arith.constant 0 : i32
    return %arg0, %c0_i32 : i32, i32
  }
  func.func @transform_1(%arg0: i32) -> (i32, i32) {
    %c0_i32 = arith.constant 0 : i32
    %c0_i32_0 = arith.constant 0 : i32
    %c0_i32_1 = arith.constant 0 : i32
    return %c0_i32, %c0_i32_0 : i32, i32
  }
  func.func @transform_2(%arg0: i32) -> (i32, i32) {
    %c0_i32 = arith.constant 0 : i32
    %c0_i32_0 = arith.constant 0 : i32
    %c0_i32_1 = arith.constant 0 : i32
    return %c0_i32, %c0_i32_0 : i32, i32
  }
  func.func @transform_3(%arg0: i32) -> (i32, i32) {
    %c0_i32 = arith.constant 0 : i32
    %c0_i32_0 = arith.constant 0 : i32
    %c0_i32_1 = arith.constant 0 : i32
    return %c0_i32, %c0_i32_0 : i32, i32
  }
  func.func @transform_4(%arg0: i32) -> (i32, i32) {
    %c0_i32 = arith.constant 0 : i32
    %c0_i32_0 = arith.constant 0 : i32
    %c0_i32_1 = arith.constant 0 : i32
    return %c0_i32, %c0_i32_0 : i32, i32
  }
  func.func @transform_5(%arg0: i32) -> (i32, i32) {
    %c0_i32 = arith.constant 0 : i32
    %c0_i32_0 = arith.constant 0 : i32
    return %c0_i32, %arg0 : i32, i32
  }
}

</mosaic_0001>

<llo_original>
// kernel: tpu_custom_call.1
$region0: #{tpu_custom_call.1}
  #allocation0 [shape = 'u32[]', space=smem, size = 0x4, offset = 0x4, fixed_abs, tag = 'smem constant byte address 0x4 - core index']
  #allocation1 [shape = 'u32[144,128]{1,0:T(1,128)}', space=vmem, size = 0x12000, scoped, tag = 'internal scratch']
  %s0 = inlined_call_operand.vmem [shape: f32[2,16], index: 0, kind: input, shape index: {}]
  %s1 = inlined_call_operand.vmem [shape: f32[128,16], index: 1, kind: input, shape index: {}]
  %s2 = inlined_call_operand.vmem [shape: f32[128,1], index: 2, kind: input, shape index: {}]
  %s3 = inlined_call_operand.vmem [shape: f32[8,128], index: 3, kind: input, shape index: {}]
  %s4 = inlined_call_operand.vmem [shape: f32[8,1], index: 4, kind: input, shape index: {}]
  %s5 = inlined_call_operand.vmem [shape: f32[8,2], index: 5, kind: output, shape index: {}]
  %s6 = sld [smem:[#allocation0]]
  $region30: #{tpu_custom_call.1} parent=0
    _
  %s8 = ssub.s32 1, %s6
  %s9 = scalar_select 0, %s8, %s6
  // Predicated region
  $region2: #{tpu_custom_call.1} parent=0 // pred_check
    _
  $region3: #{tpu_custom_call.1} parent=0 // pred_check_branch
    %11 = sbr.rel (0) target = $region5
  $region4: #{tpu_custom_call.1} parent=0 // pred_region
    _
  $region5: #{tpu_custom_call.1} parent=0 // pred_fallthru
    _
  // Predicated region
  $region6: #{tpu_custom_call.1} parent=0 // pred_check
    _
  $region7: #{tpu_custom_call.1} parent=0 // pred_check_branch
    %13 = sbr.rel (0) target = $region9
  $region8: #{tpu_custom_call.1} parent=0 // pred_region
    _
  $region9: #{tpu_custom_call.1} parent=0 // pred_fallthru
    _
  // Predicated region
  $region10: #{tpu_custom_call.1} parent=0 // pred_check
    _
  $region11: #{tpu_custom_call.1} parent=0 // pred_check_branch
    %15 = sbr.rel (0) target = $region13
  $region12: #{tpu_custom_call.1} parent=0 // pred_region
    _
  $region13: #{tpu_custom_call.1} parent=0 // pred_fallthru
    _
  // Predicated region
  $region14: #{tpu_custom_call.1} parent=0 // pred_check
    _
  $region15: #{tpu_custom_call.1} parent=0 // pred_check_branch
    %17 = sbr.rel (0) target = $region17
  $region16: #{tpu_custom_call.1} parent=0 // pred_region
    _
  $region17: #{tpu_custom_call.1} parent=0 // pred_fallthru
    _
  // Predicated region
  $region18: #{tpu_custom_call.1} parent=0 // pred_check
    _
  $region19: #{tpu_custom_call.1} parent=0 // pred_check_branch
    %19 = sbr.rel (0) target = $region21
  $region20: #{tpu_custom_call.1} parent=0 // pred_region
    _
  $region21: #{tpu_custom_call.1} parent=0 // pred_fallthru
    _
  %v20 = vld [vmem:[%s1] sm:$0xff]
  %v21 = vld [vmem:[%s1 + $0x8] sm:$0xff]
  %v22 = vld [vmem:[%s1 + $0x10] sm:$0xff]
  %v23 = vld [vmem:[%s1 + $0x18] sm:$0xff]
  %v24 = vld [vmem:[%s1 + $0x20] sm:$0xff]
  %v25 = vld [vmem:[%s1 + $0x28] sm:$0xff]
  %v26 = vld [vmem:[%s1 + $0x30] sm:$0xff]
  %v27 = vld [vmem:[%s1 + $0x38] sm:$0xff]
  %v28 = vld [vmem:[%s1 + $0x40] sm:$0xff]
  %v29 = vld [vmem:[%s1 + $0x48] sm:$0xff]
  %v30 = vld [vmem:[%s1 + $0x50] sm:$0xff]
  %v31 = vld [vmem:[%s1 + $0x58] sm:$0xff]
  %v32 = vld [vmem:[%s1 + $0x60] sm:$0xff]
  %v33 = vld [vmem:[%s1 + $0x68] sm:$0xff]
  %v34 = vld [vmem:[%s1 + $0x70] sm:$0xff]
  %v35 = vld [vmem:[%s1 + $0x78] sm:$0xff]
  %v36 = vld [vmem:[%s0] sm:$0x3]
  %v37 = vld [vmem:[%s2] sm:$0xff]
  %v38 = vld [vmem:[%s2 + $0x8] sm:$0xff]
  %v39 = vld [vmem:[%s2 + $0x10] sm:$0xff]
  %v40 = vld [vmem:[%s2 + $0x18] sm:$0xff]
  %v41 = vld [vmem:[%s2 + $0x20] sm:$0xff]
  %v42 = vld [vmem:[%s2 + $0x28] sm:$0xff]
  %v43 = vld [vmem:[%s2 + $0x30] sm:$0xff]
  %v44 = vld [vmem:[%s2 + $0x38] sm:$0xff]
  %v45 = vld [vmem:[%s2 + $0x40] sm:$0xff]
  %v46 = vld [vmem:[%s2 + $0x48] sm:$0xff]
  %v47 = vld [vmem:[%s2 + $0x50] sm:$0xff]
  %v48 = vld [vmem:[%s2 + $0x58] sm:$0xff]
  %v49 = vld [vmem:[%s2 + $0x60] sm:$0xff]
  %v50 = vld [vmem:[%s2 + $0x68] sm:$0xff]
  %v51 = vld [vmem:[%s2 + $0x70] sm:$0xff]
  %v52 = vld [vmem:[%s2 + $0x78] sm:$0xff]
  %54 = vset.pattern.permute.xlu0 0
  %55 = vperm.xlu0 %54, %v37
  %v56 = vpop.permute.xlu0 %55
  %59 = vset.pattern.permute.xlu0 0
  %60 = vperm.xlu0 %59, %v38
  %v61 = vpop.permute.xlu0 %60
  %64 = vset.pattern.permute.xlu0 0
  %65 = vperm.xlu0 %64, %v39
  %v66 = vpop.permute.xlu0 %65
  %69 = vset.pattern.permute.xlu0 0
  %70 = vperm.xlu0 %69, %v40
  %v71 = vpop.permute.xlu0 %70
  %74 = vset.pattern.permute.xlu0 0
  %75 = vperm.xlu0 %74, %v41
  %v76 = vpop.permute.xlu0 %75
  %79 = vset.pattern.permute.xlu0 0
  %80 = vperm.xlu0 %79, %v42
  %v81 = vpop.permute.xlu0 %80
  %84 = vset.pattern.permute.xlu0 0
  %85 = vperm.xlu0 %84, %v43
  %v86 = vpop.permute.xlu0 %85
  %89 = vset.pattern.permute.xlu0 0
  %90 = vperm.xlu0 %89, %v44
  %v91 = vpop.permute.xlu0 %90
  %94 = vset.pattern.permute.xlu0 0
  %95 = vperm.xlu0 %94, %v45
  %v96 = vpop.permute.xlu0 %95
  %99 = vset.pattern.permute.xlu0 0
  %100 = vperm.xlu0 %99, %v46
  %v101 = vpop.permute.xlu0 %100
  %104 = vset.pattern.permute.xlu0 0
  %105 = vperm.xlu0 %104, %v47
  %v106 = vpop.permute.xlu0 %105
  %109 = vset.pattern.permute.xlu0 0
  %110 = vperm.xlu0 %109, %v48
  %v111 = vpop.permute.xlu0 %110
  %114 = vset.pattern.permute.xlu0 0
  %115 = vperm.xlu0 %114, %v49
  %v116 = vpop.permute.xlu0 %115
  %119 = vset.pattern.permute.xlu0 0
  %120 = vperm.xlu0 %119, %v50
  %v121 = vpop.permute.xlu0 %120
  %124 = vset.pattern.permute.xlu0 0
  %125 = vperm.xlu0 %124, %v51
  %v126 = vpop.permute.xlu0 %125
  %129 = vset.pattern.permute.xlu0 0
  %130 = vperm.xlu0 %129, %v52
  %v131 = vpop.permute.xlu0 %130
  %vm133 = vcmask 130048
  %v135 = vsel %vm133, %v20, 0
  %v138 = vsel %vm133, %v21, 0
  %v141 = vsel %vm133, %v22, 0
  %v144 = vsel %vm133, %v23, 0
  %v147 = vsel %vm133, %v24, 0
  %v150 = vsel %vm133, %v25, 0
  %v153 = vsel %vm133, %v26, 0
  %v156 = vsel %vm133, %v27, 0
  %v159 = vsel %vm133, %v28, 0
  %v162 = vsel %vm133, %v29, 0
  %v165 = vsel %vm133, %v30, 0
  %v168 = vsel %vm133, %v31, 0
  %v171 = vsel %vm133, %v32, 0
  %v174 = vsel %vm133, %v33, 0
  %v177 = vsel %vm133, %v34, 0
  %v180 = vsel %vm133, %v35, 0
  %v183 = vsel %vm133, %v36, 0
  %185 = vmatprep.subr.mxu0 0.0
  %186 = vmatpush1.xpose.msra.mxu0 %v183
  %187 = vmatprep.subr.mxu0 0.0
  %188 = vmatpush1.xpose.msra.mxu0 0.0
  %189 = vmatprep.subr.mxu0 0.0
  %190 = vmatpush1.xpose.msra.mxu0 0.0
  %191 = vmatprep.subr.mxu0 0.0
  %192 = vmatpush1.xpose.msra.mxu0 0.0
  %193 = vmatprep.subr.mxu0 0.0
  %194 = vmatpush1.xpose.msra.mxu0 0.0
  %195 = vmatprep.subr.mxu0 0.0
  %196 = vmatpush1.xpose.msra.mxu0 0.0
  %197 = vmatprep.subr.mxu0 0.0
  %198 = vmatpush1.xpose.msra.mxu0 0.0
  %199 = vmatprep.subr.mxu0 0.0
  %200 = vmatpush1.xpose.msra.mxu0 0.0
  %201 = vmatprep.subr.mxu0 0.0
  %202 = vmatpush1.xpose.msra.mxu0 0.0
  %203 = vmatprep.subr.mxu0 0.0
  %204 = vmatpush1.xpose.msra.mxu0 0.0
  %205 = vmatprep.subr.mxu0 0.0
  %206 = vmatpush1.xpose.msra.mxu0 0.0
  %207 = vmatprep.subr.mxu0 0.0
  %208 = vmatpush1.xpose.msra.mxu0 0.0
  %209 = vmatprep.subr.mxu0 0.0
  %210 = vmatpush1.xpose.msra.mxu0 0.0
  %211 = vmatprep.subr.mxu0 0.0
  %212 = vmatpush1.xpose.msra.mxu0 0.0
  %213 = vmatprep.subr.mxu0 0.0
  %214 = vmatpush1.xpose.msra.mxu0 0.0
  %215 = vmatprep.subr.mxu0 0.0
  %216 = vmatpush1.xpose.msra.mxu0 0.0
  %217 = vmatprep.subr.mxu0 0.0
  %218 = vmatpush1.xpose.msra.mxu0 0.0
  %219 = vmatprep.subr.mxu0 0.0
  %220 = vmatpush1.xpose.msra.mxu0 0.0
  %221 = vmatprep.subr.mxu0 0.0
  %222 = vmatpush1.xpose.msra.mxu0 0.0
  %223 = vmatprep.subr.mxu0 0.0
  %224 = vmatpush1.xpose.msra.mxu0 0.0
  %225 = vmatprep.subr.mxu0 0.0
  %226 = vmatpush1.xpose.msra.mxu0 0.0
  %227 = vmatprep.subr.mxu0 0.0
  %228 = vmatpush1.xpose.msra.mxu0 0.0
  %229 = vmatprep.subr.mxu0 0.0
  %230 = vmatpush1.xpose.msra.mxu0 0.0
  %231 = vmatprep.subr.mxu0 0.0
  %232 = vmatpush1.xpose.msra.mxu0 0.0
  %233 = vmatprep.subr.mxu0 0.0
  %234 = vmatpush1.xpose.msra.mxu0 0.0
  %235 = vmatprep.subr.mxu0 0.0
  %236 = vmatpush1.xpose.msra.mxu0 0.0
  %237 = vmatprep.subr.mxu0 0.0
  %238 = vmatpush1.xpose.msra.mxu0 0.0
  %239 = vmatprep.subr.mxu0 0.0
  %240 = vmatpush1.xpose.msra.mxu0 0.0
  %241 = vmatprep.subr.mxu0 0.0
  %242 = vmatpush1.xpose.msra.mxu0 0.0
  %243 = vmatprep.subr.mxu0 0.0
  %244 = vmatpush1.xpose.msra.mxu0 0.0
  %245 = vmatprep.subr.mxu0 0.0
  %246 = vmatpush1.xpose.msra.mxu0 0.0
  %247 = vmatprep.subr.mxu0 0.0
  %248 = vmatpush1.xpose.msra.mxu0 0.0
  %249 = vmatprep.mubr.f32.mxu0 0.0
  %250 = vmatmul.mubr.f32.gmra.mrb[0].mxu0 %v135
  %v251 = vpop.f32.mrb[0].mxu0
  %v252 = vadd.f32 %v56, %v251
  %v253 = vpop.f32.mrb[0].mxu0
  %254 = vmatprep.mubr.f32.mxu0 0.0
  %255 = vmatmul.mubr.f32.gmra.mrb[0].mxu0 %v138
  %v256 = vpop.f32.mrb[0].mxu0
  %v257 = vadd.f32 %v61, %v256
  %v258 = vpop.f32.mrb[0].mxu0
  %259 = vmatprep.mubr.f32.mxu0 0.0
  %260 = vmatmul.mubr.f32.gmra.mrb[0].mxu0 %v141
  %v261 = vpop.f32.mrb[0].mxu0
  %v262 = vadd.f32 %v66, %v261
  %v263 = vpop.f32.mrb[0].mxu0
  %264 = vmatprep.mubr.f32.mxu0 0.0
  %265 = vmatmul.mubr.f32.gmra.mrb[0].mxu0 %v144
  %v266 = vpop.f32.mrb[0].mxu0
  %v267 = vadd.f32 %v71, %v266
  %v268 = vpop.f32.mrb[0].mxu0
  %269 = vmatprep.mubr.f32.mxu0 0.0
  %270 = vmatmul.mubr.f32.gmra.mrb[0].mxu0 %v147
  %v271 = vpop.f32.mrb[0].mxu0
  %v272 = vadd.f32 %v76, %v271
  %v273 = vpop.f32.mrb[0].mxu0
  %274 = vmatprep.mubr.f32.mxu0 0.0
  %275 = vmatmul.mubr.f32.gmra.mrb[0].mxu0 %v150
  %v276 = vpop.f32.mrb[0].mxu0
  %v277 = vadd.f32 %v81, %v276
  %v278 = vpop.f32.mrb[0].mxu0
  %279 = vmatprep.mubr.f32.mxu0 0.0
  %280 = vmatmul.mubr.f32.gmra.mrb[0].mxu0 %v153
  %v281 = vpop.f32.mrb[0].mxu0
  %v282 = vadd.f32 %v86, %v281
  %v283 = vpop.f32.mrb[0].mxu0
  %284 = vmatprep.mubr.f32.mxu0 0.0
  %285 = vmatmul.mubr.f32.gmra.mrb[0].mxu0 %v156
  %v286 = vpop.f32.mrb[0].mxu0
  %v287 = vadd.f32 %v91, %v286
  %v288 = vpop.f32.mrb[0].mxu0
  %289 = vmatprep.mubr.f32.mxu0 0.0
  %290 = vmatmul.mubr.f32.gmra.mrb[0].mxu0 %v159
  %v291 = vpop.f32.mrb[0].mxu0
  %v292 = vadd.f32 %v96, %v291
  %v293 = vpop.f32.mrb[0].mxu0
  %294 = vmatprep.mubr.f32.mxu0 0.0
  %295 = vmatmul.mubr.f32.gmra.mrb[0].mxu0 %v162
  %v296 = vpop.f32.mrb[0].mxu0
  %v297 = vadd.f32 %v101, %v296
  %v298 = vpop.f32.mrb[0].mxu0
  %299 = vmatprep.mubr.f32.mxu0 0.0
  %300 = vmatmul.mubr.f32.gmra.mrb[0].mxu0 %v165
  %v301 = vpop.f32.mrb[0].mxu0
  %v302 = vadd.f32 %v106, %v301
  %v303 = vpop.f32.mrb[0].mxu0
  %304 = vmatprep.mubr.f32.mxu0 0.0
  %305 = vmatmul.mubr.f32.gmra.mrb[0].mxu0 %v168
  %v306 = vpop.f32.mrb[0].mxu0
  %v307 = vadd.f32 %v111, %v306
  %v308 = vpop.f32.mrb[0].mxu0
  %309 = vmatprep.mubr.f32.mxu0 0.0
  %310 = vmatmul.mubr.f32.gmra.mrb[0].mxu0 %v171
  %v311 = vpop.f32.mrb[0].mxu0
  %v312 = vadd.f32 %v116, %v311
  %v313 = vpop.f32.mrb[0].mxu0
  %314 = vmatprep.mubr.f32.mxu0 0.0
  %315 = vmatmul.mubr.f32.gmra.mrb[0].mxu0 %v174
  %v316 = vpop.f32.mrb[0].mxu0
  %v317 = vadd.f32 %v121, %v316
  %v318 = vpop.f32.mrb[0].mxu0
  %319 = vmatprep.mubr.f32.mxu0 0.0
  %320 = vmatmul.mubr.f32.gmra.mrb[0].mxu0 %v177
  %v321 = vpop.f32.mrb[0].mxu0
  %v322 = vadd.f32 %v126, %v321
  %v323 = vpop.f32.mrb[0].mxu0
  %324 = vmatprep.mubr.f32.mxu0 0.0
  %325 = vmatmul.mubr.f32.gmra.mrb[0].mxu0 %v180
  %v326 = vpop.f32.mrb[0].mxu0
  %v327 = vadd.f32 %v131, %v326
  %v328 = vpop.f32.mrb[0].mxu0
  %329 = vdwg.mxu0
  %v330 = vmax.f32 %v252, 0.0
  %v331 = vmax.f32 %v257, 0.0
  %v332 = vmax.f32 %v262, 0.0
  %v333 = vmax.f32 %v267, 0.0
  %v334 = vmax.f32 %v272, 0.0
  %v335 = vmax.f32 %v277, 0.0
  %v336 = vmax.f32 %v282, 0.0
  %v337 = vmax.f32 %v287, 0.0
  %v338 = vmax.f32 %v292, 0.0
  %v339 = vmax.f32 %v297, 0.0
  %v340 = vmax.f32 %v302, 0.0
  %v341 = vmax.f32 %v307, 0.0
  %v342 = vmax.f32 %v312, 0.0
  %v343 = vmax.f32 %v317, 0.0
  %v344 = vmax.f32 %v322, 0.0
  %v345 = vmax.f32 %v327, 0.0
  %v346 = vld [vmem:[%s3] sm:$0xff]
  %v347 = vld [vmem:[%s4] sm:$0xff]
  %349 = vset.pattern.permute.xlu0 0
  %350 = vperm.xlu0 %349, %v347
  %v351 = vpop.permute.xlu0 %350
  %353 = vmatprep.subr.mxu0 0.0
  %354 = vmatpush1.msra.mxu0 %v330
  %355 = vmatprep.subr.mxu0 0.0
  %356 = vmatpush1.msra.mxu0 %v331
  %357 = vmatprep.subr.mxu0 0.0
  %358 = vmatpush1.msra.mxu0 %v332
  %359 = vmatprep.subr.mxu0 0.0
  %360 = vmatpush1.msra.mxu0 %v333
  %361 = vmatprep.subr.mxu0 0.0
  %362 = vmatpush1.msra.mxu0 %v334
  %363 = vmatprep.subr.mxu0 0.0
  %364 = vmatpush1.msra.mxu0 %v335
  %365 = vmatprep.subr.mxu0 0.0
  %366 = vmatpush1.msra.mxu0 %v336
  %367 = vmatprep.subr.mxu0 0.0
  %368 = vmatpush1.msra.mxu0 %v337
  %369 = vmatprep.subr.mxu0 0.0
  %370 = vmatpush1.msra.mxu0 %v338
  %371 = vmatprep.subr.mxu0 0.0
  %372 = vmatpush1.msra.mxu0 %v339
  %373 = vmatprep.subr.mxu0 0.0
  %374 = vmatpush1.msra.mxu0 %v340
  %375 = vmatprep.subr.mxu0 0.0
  %376 = vmatpush1.msra.mxu0 %v341
  %377 = vmatprep.subr.mxu0 0.0
  %378 = vmatpush1.msra.mxu0 %v342
  %379 = vmatprep.subr.mxu0 0.0
  %380 = vmatpush1.msra.mxu0 %v343
  %381 = vmatprep.subr.mxu0 0.0
  %382 = vmatpush1.msra.mxu0 %v344
  %383 = vmatprep.subr.mxu0 0.0
  %384 = vmatpush1.msra.mxu0 %v345
  %385 = vmatprep.subr.mxu0 0.0
  %386 = vmatpush1.msra.mxu0 0.0
  %387 = vmatprep.subr.mxu0 0.0
  %388 = vmatpush1.msra.mxu0 0.0
  %389 = vmatprep.subr.mxu0 0.0
  %390 = vmatpush1.msra.mxu0 0.0
  %391 = vmatprep.subr.mxu0 0.0
  %392 = vmatpush1.msra.mxu0 0.0
  %393 = vmatprep.subr.mxu0 0.0
  %394 = vmatpush1.msra.mxu0 0.0
  %395 = vmatprep.subr.mxu0 0.0
  %396 = vmatpush1.msra.mxu0 0.0
  %397 = vmatprep.subr.mxu0 0.0
  %398 = vmatpush1.msra.mxu0 0.0
  %399 = vmatprep.subr.mxu0 0.0
  %400 = vmatpush1.msra.mxu0 0.0
  %401 = vmatprep.subr.mxu0 0.0
  %402 = vmatpush1.msra.mxu0 0.0
  %403 = vmatprep.subr.mxu0 0.0
  %404 = vmatpush1.msra.mxu0 0.0
  %405 = vmatprep.subr.mxu0 0.0
  %406 = vmatpush1.msra.mxu0 0.0
  %407 = vmatprep.subr.mxu0 0.0
  %408 = vmatpush1.msra.mxu0 0.0
  %409 = vmatprep.subr.mxu0 0.0
  %410 = vmatpush1.msra.mxu0 0.0
  %411 = vmatprep.subr.mxu0 0.0
  %412 = vmatpush1.msra.mxu0 0.0
  %413 = vmatprep.subr.mxu0 0.0
  %414 = vmatpush1.msra.mxu0 0.0
  %415 = vmatprep.subr.mxu0 0.0
  %416 = vmatpush1.msra.mxu0 0.0
  %417 = vmatprep.mubr.f32.mxu0 0.0
  %418 = vmatmul.mubr.f32.gmra.mrb[0].mxu0 %v346
  %v419 = vpop.f32.mrb[0].mxu0
  %v420 = vadd.f32 %v351, %v419
  %v421 = vpop.f32.mrb[0].mxu0
  %422 = vdwg.mxu0
  %vm423 = vcmask 15360
  %424 = vst.msk [vmem:[%s5] sm:$0xff] %vm423, %v420
  // Predicated region
  $region22: #{tpu_custom_call.1} parent=0 // pred_check
    _
  $region23: #{tpu_custom_call.1} parent=0 // pred_check_branch
    %426 = sbr.rel (0) target = $region25
  $region24: #{tpu_custom_call.1} parent=0 // pred_region
    _
  $region25: #{tpu_custom_call.1} parent=0 // pred_fallthru
    _
  // Predicated region
  $region26: #{tpu_custom_call.1} parent=0 // pred_check
    _
  $region27: #{tpu_custom_call.1} parent=0 // pred_check_branch
    %428 = sbr.rel (0) target = $region29
  $region28: #{tpu_custom_call.1} parent=0 // pred_region
    _
  $region29: #{tpu_custom_call.1} parent=0 // pred_fallthru
    _

</llo_original>
